<compile_context>
chip_gen: v5e
topology: v5e:2x2
jax: 0.10.0
libtpu: 0.0.40
codegen_flags: <defaults>
</compile_context>

<pallas_src>
import jax
import jax.numpy as jnp
from jax.experimental import pallas as pl
from jax.experimental.pallas import tpu as pltpu

# ----------------------------- configuration -----------------------------
IN_FEATURES = 2      # layer1: Linear(2, 8)
HIDDEN1 = 8
HIDDEN2 = 4          # layer2: Linear(8, 4)
OUT_FEATURES = 1     # layer3: LazyLinear(out_features=1) -> in_features = 4
BATCH = 8            # demo batch (one full sublane group)

SLAB_ROWS, SLAB_COLS = 8, 128          # one vreg worth of parameters (4 KiB)
MAX_TILE_B = 512                       # batch tile cap if the kernel is scaled up

# Slab layout (static offsets, all slices compile-time constant):
#   w1 : rows 0:2 , cols 0:8     (2, 8)
#   b1 : rows 2:3 , cols 0:8     (1, 8)
#   w2 : rows 0:8 , cols 8:12    (8, 4)
#   b2 : rows 0:1 , cols 12:16   (1, 4)
#   w3 : rows 1:2 , cols 12:16   (1, 4)   (stored transposed: (4,1) -> (1,4))
#   b3 : rows 2:3 , cols 16:17   (1, 1)


# ----------------------------- kernel -----------------------------
def mlp_kernel(x_ref, p_ref, out_ref):
    x = x_ref[...]                       # (TB, 2)
    p = p_ref[...]                       # (8, 128): one dense vreg load

    # ---- layer 1: (TB,2) @ (2,8) + b1  as 2 broadcast VPU mul-adds ----
    h = (x[:, 0:1] * p[0:1, 0:HIDDEN1]
         + x[:, 1:2] * p[1:2, 0:HIDDEN1]
         + p[2:3, 0:HIDDEN1])
    h = jnp.maximum(h, 0.0)              # ReLU (VPU)

    # ---- layer 2: (TB,8) @ (8,4) + b2  as 8 broadcast VPU mul-adds ----
    a = jnp.broadcast_to(p[0:1, 12:12 + HIDDEN2], (h.shape[0], HIDDEN2))  # b2
    for k in range(HIDDEN1):             # static, unrolled at trace time
        a = a + h[:, k:k + 1] * p[k:k + 1, 8:8 + HIDDEN2]
    a = jnp.maximum(a, 0.0)              # ReLU (VPU)

    # ---- layer 3: (TB,4) @ (4,1) + b3  as a 4-lane weighted reduction ----
    y = jnp.sum(a * p[1:2, 12:12 + HIDDEN2], axis=-1, keepdims=True) \
        + p[2:3, 16:17]
    out_ref[...] = y


# ----------------------------- param packing -----------------------------
def pack_params(p):
    """Pack kernel-ready params (w: (in,out), b: (1,out)) into one (8,128) slab."""
    slab = jnp.zeros((SLAB_ROWS, SLAB_COLS), jnp.float32)
    slab = slab.at[0:2, 0:8].set(p["w1"])
    slab = slab.at[2:3, 0:8].set(p["b1"])
    slab = slab.at[0:8, 8:12].set(p["w2"])
    slab = slab.at[0:1, 12:16].set(p["b2"])
    slab = slab.at[1:2, 12:16].set(p["w3"].T)   # (4,1) -> (1,4)
    slab = slab.at[2:3, 16:17].set(p["b3"])
    return slab


# ----------------------------- wrapper -----------------------------
def linear_relu_regressor_forward(x, packed):
    B = x.shape[0]

    # Batch tile: multiple of 8 sublanes, capped so VMEM stays tiny even on
    # v7x's 64 MiB (a 512x128-padded f32 tile double-buffered is ~0.5 MiB).
    tb = min(MAX_TILE_B, max(8, B))
    tb = (tb // 8) * 8
    b_pad = pl.cdiv(B, tb) * tb
    if b_pad != B:
        x = jnp.pad(x, ((0, b_pad - B), (0, 0)))
    grid = (b_pad // tb,)

    cost = pl.CostEstimate(
        flops=2 * b_pad * (IN_FEATURES * HIDDEN1
                           + HIDDEN1 * HIDDEN2
                           + HIDDEN2 * OUT_FEATURES),
        transcendentals=0,
        bytes_accessed=4 * (b_pad * (IN_FEATURES + OUT_FEATURES)
                            + SLAB_ROWS * SLAB_COLS),
    )

    y = pl.pallas_call(
        mlp_kernel,
        out_shape=jax.ShapeDtypeStruct((b_pad, OUT_FEATURES), jnp.float32),
        grid=grid,
        in_specs=[
            pl.BlockSpec((tb, IN_FEATURES), lambda i: (i, 0)),
            # Whole-slab, block index 0 for every grid step -> loaded once,
            # stays resident in VMEM across the batch grid.
            pl.BlockSpec((SLAB_ROWS, SLAB_COLS), lambda i: (0, 0)),
        ],
        out_specs=pl.BlockSpec((tb, OUT_FEATURES), lambda i: (i, 0)),
        compiler_params=pltpu.CompilerParams(
            dimension_semantics=("parallel",)),    # 2x on v7x, no-op on v5e/v6e
        cost_estimate=cost,
    )(x, packed)

    return y[:B] if b_pad != B else y


# ----------------------------- parameter init -----------------------------
def init_params(key):
    """PyTorch-style Linear init: U(-1/sqrt(fan_in), 1/sqrt(fan_in))."""
    ks = jax.random.split(key, 6)

    def uni(k, shape, fan_in):
        bound = 1.0 / (fan_in ** 0.5)
        return jax.random.uniform(k, shape, jnp.float32, -bound, bound)

    return {
        # stored kernel-ready: (in, out)
        "w1": uni(ks[0], (IN_FEATURES, HIDDEN1), IN_FEATURES),
        "b1": uni(ks[1], (1, HIDDEN1), IN_FEATURES),
        "w2": uni(ks[2], (HIDDEN1, HIDDEN2), HIDDEN1),
        "b2": uni(ks[3], (1, HIDDEN2), HIDDEN1),
        "w3": uni(ks[4], (HIDDEN2, OUT_FEATURES), HIDDEN2),
        "b3": uni(ks[5], (1, OUT_FEATURES), HIDDEN2),
    }


# ----------------------------- reference (pure JAX) -----------------------------
def reference_forward(x, p):
    h = jnp.maximum(x @ p["w1"] + p["b1"], 0.0)
    h = jnp.maximum(h @ p["w2"] + p["b2"], 0.0)
    return h @ p["w3"] + p["b3"]


# ----------------------------- main -----------------------------
if __name__ == "__main__":
    key = jax.random.PRNGKey(0)
    k_x, k_p = jax.random.split(key)
    x = jax.random.normal(k_x, (BATCH, IN_FEATURES), jnp.float32)
    params = init_params(k_p)
    packed = pack_params(params)          # packed once, reused for every call

    y = jax.jit(linear_relu_regressor_forward)(x, packed)
    jax.block_until_ready(y)

    assert y.shape == (BATCH, OUT_FEATURES), y.shape
    assert y.dtype == jnp.float32
    assert bool(jnp.all(jnp.isfinite(y)))

    y_ref = reference_forward(x, params)
    assert bool(jnp.allclose(y, y_ref, atol=1e-5, rtol=1e-5)), (y, y_ref)

    print("KERNEL_OK")
</pallas_src>

<mosaic_0001>
module attributes {stable_mosaic.version = 11 : i64} {
  func.func @mlp_kernel(%arg0: i32, %arg1: memref<8x2xf32, #tpu.memory_space<vmem>>, %arg2: memref<8x128xf32, #tpu.memory_space<vmem>>, %arg3: memref<8x1xf32, #tpu.memory_space<vmem>>) attributes {dimension_semantics = [#tpu.dimension_semantics<parallel>], iteration_bounds = array<i64: 1>, scalar_prefetch = 0 : i64, scratch_operands = 0 : i64, tpu.core_type = #tpu.core_type<tc>, window_params = [{transform_indices = @transform_0, window_bounds = array<i64: 8, 2>}, {pipeline_mode = #tpu.pipeline_mode<synchronous>, transform_indices = @transform_1, window_bounds = array<i64: 8, 128>}, {transform_indices = @transform_2, window_bounds = array<i64: 8, 1>}]} {
    %c0 = arith.constant 0 : index
    %c0_0 = arith.constant 0 : index
    %0 = vector.load %arg1[%c0, %c0_0] : memref<8x2xf32, #tpu.memory_space<vmem>>, vector<8x2xf32>
    %c0_1 = arith.constant 0 : index
    %c0_2 = arith.constant 0 : index
    %1 = vector.load %arg2[%c0_1, %c0_2] : memref<8x128xf32, #tpu.memory_space<vmem>>, vector<8x128xf32>
    %2 = vector.extract_strided_slice %0 {offsets = [0, 0], sizes = [8, 1], strides = [1, 1]} : vector<8x2xf32> to vector<8x1xf32>
    %3 = vector.extract_strided_slice %1 {offsets = [0, 0], sizes = [1, 8], strides = [1, 1]} : vector<8x128xf32> to vector<1x8xf32>
    %4 = vector.broadcast %2 : vector<8x1xf32> to vector<8x8xf32>
    %5 = vector.broadcast %3 : vector<1x8xf32> to vector<8x8xf32>
    %6 = arith.mulf %4, %5 : vector<8x8xf32>
    %7 = vector.extract_strided_slice %0 {offsets = [0, 1], sizes = [8, 1], strides = [1, 1]} : vector<8x2xf32> to vector<8x1xf32>
    %8 = vector.extract_strided_slice %1 {offsets = [1, 0], sizes = [1, 8], strides = [1, 1]} : vector<8x128xf32> to vector<1x8xf32>
    %9 = vector.broadcast %7 : vector<8x1xf32> to vector<8x8xf32>
    %10 = vector.broadcast %8 : vector<1x8xf32> to vector<8x8xf32>
    %11 = arith.mulf %9, %10 : vector<8x8xf32>
    %12 = arith.addf %6, %11 : vector<8x8xf32>
    %13 = vector.extract_strided_slice %1 {offsets = [2, 0], sizes = [1, 8], strides = [1, 1]} : vector<8x128xf32> to vector<1x8xf32>
    %14 = vector.broadcast %13 : vector<1x8xf32> to vector<8x8xf32>
    %15 = arith.addf %12, %14 : vector<8x8xf32>
    %cst = arith.constant 0.000000e+00 : f32
    %16 = vector.broadcast %cst : f32 to vector<8x8xf32>
    %17 = arith.maximumf %15, %16 : vector<8x8xf32>
    %18 = vector.extract_strided_slice %1 {offsets = [0, 12], sizes = [1, 4], strides = [1, 1]} : vector<8x128xf32> to vector<1x4xf32>
    %19 = vector.shape_cast %18 : vector<1x4xf32> to vector<1x4xf32>
    %20 = vector.broadcast %19 : vector<1x4xf32> to vector<8x4xf32>
    %21 = vector.extract_strided_slice %17 {offsets = [0, 0], sizes = [8, 1], strides = [1, 1]} : vector<8x8xf32> to vector<8x1xf32>
    %22 = vector.extract_strided_slice %1 {offsets = [0, 8], sizes = [1, 4], strides = [1, 1]} : vector<8x128xf32> to vector<1x4xf32>
    %23 = vector.broadcast %21 : vector<8x1xf32> to vector<8x4xf32>
    %24 = vector.broadcast %22 : vector<1x4xf32> to vector<8x4xf32>
    %25 = arith.mulf %23, %24 : vector<8x4xf32>
    %26 = arith.addf %20, %25 : vector<8x4xf32>
    %27 = vector.extract_strided_slice %17 {offsets = [0, 1], sizes = [8, 1], strides = [1, 1]} : vector<8x8xf32> to vector<8x1xf32>
    %28 = vector.extract_strided_slice %1 {offsets = [1, 8], sizes = [1, 4], strides = [1, 1]} : vector<8x128xf32> to vector<1x4xf32>
    %29 = vector.broadcast %27 : vector<8x1xf32> to vector<8x4xf32>
    %30 = vector.broadcast %28 : vector<1x4xf32> to vector<8x4xf32>
    %31 = arith.mulf %29, %30 : vector<8x4xf32>
    %32 = arith.addf %26, %31 : vector<8x4xf32>
    %33 = vector.extract_strided_slice %17 {offsets = [0, 2], sizes = [8, 1], strides = [1, 1]} : vector<8x8xf32> to vector<8x1xf32>
    %34 = vector.extract_strided_slice %1 {offsets = [2, 8], sizes = [1, 4], strides = [1, 1]} : vector<8x128xf32> to vector<1x4xf32>
    %35 = vector.broadcast %33 : vector<8x1xf32> to vector<8x4xf32>
    %36 = vector.broadcast %34 : vector<1x4xf32> to vector<8x4xf32>
    %37 = arith.mulf %35, %36 : vector<8x4xf32>
    %38 = arith.addf %32, %37 : vector<8x4xf32>
    %39 = vector.extract_strided_slice %17 {offsets = [0, 3], sizes = [8, 1], strides = [1, 1]} : vector<8x8xf32> to vector<8x1xf32>
    %40 = vector.extract_strided_slice %1 {offsets = [3, 8], sizes = [1, 4], strides = [1, 1]} : vector<8x128xf32> to vector<1x4xf32>
    %41 = vector.broadcast %39 : vector<8x1xf32> to vector<8x4xf32>
    %42 = vector.broadcast %40 : vector<1x4xf32> to vector<8x4xf32>
    %43 = arith.mulf %41, %42 : vector<8x4xf32>
    %44 = arith.addf %38, %43 : vector<8x4xf32>
    %45 = vector.extract_strided_slice %17 {offsets = [0, 4], sizes = [8, 1], strides = [1, 1]} : vector<8x8xf32> to vector<8x1xf32>
    %46 = vector.extract_strided_slice %1 {offsets = [4, 8], sizes = [1, 4], strides = [1, 1]} : vector<8x128xf32> to vector<1x4xf32>
    %47 = vector.broadcast %45 : vector<8x1xf32> to vector<8x4xf32>
    %48 = vector.broadcast %46 : vector<1x4xf32> to vector<8x4xf32>
    %49 = arith.mulf %47, %48 : vector<8x4xf32>
    %50 = arith.addf %44, %49 : vector<8x4xf32>
    %51 = vector.extract_strided_slice %17 {offsets = [0, 5], sizes = [8, 1], strides = [1, 1]} : vector<8x8xf32> to vector<8x1xf32>
    %52 = vector.extract_strided_slice %1 {offsets = [5, 8], sizes = [1, 4], strides = [1, 1]} : vector<8x128xf32> to vector<1x4xf32>
    %53 = vector.broadcast %51 : vector<8x1xf32> to vector<8x4xf32>
    %54 = vector.broadcast %52 : vector<1x4xf32> to vector<8x4xf32>
    %55 = arith.mulf %53, %54 : vector<8x4xf32>
    %56 = arith.addf %50, %55 : vector<8x4xf32>
    %57 = vector.extract_strided_slice %17 {offsets = [0, 6], sizes = [8, 1], strides = [1, 1]} : vector<8x8xf32> to vector<8x1xf32>
    %58 = vector.extract_strided_slice %1 {offsets = [6, 8], sizes = [1, 4], strides = [1, 1]} : vector<8x128xf32> to vector<1x4xf32>
    %59 = vector.broadcast %57 : vector<8x1xf32> to vector<8x4xf32>
    %60 = vector.broadcast %58 : vector<1x4xf32> to vector<8x4xf32>
    %61 = arith.mulf %59, %60 : vector<8x4xf32>
    %62 = arith.addf %56, %61 : vector<8x4xf32>
    %63 = vector.extract_strided_slice %17 {offsets = [0, 7], sizes = [8, 1], strides = [1, 1]} : vector<8x8xf32> to vector<8x1xf32>
    %64 = vector.extract_strided_slice %1 {offsets = [7, 8], sizes = [1, 4], strides = [1, 1]} : vector<8x128xf32> to vector<1x4xf32>
    %65 = vector.broadcast %63 : vector<8x1xf32> to vector<8x4xf32>
    %66 = vector.broadcast %64 : vector<1x4xf32> to vector<8x4xf32>
    %67 = arith.mulf %65, %66 : vector<8x4xf32>
    %68 = arith.addf %62, %67 : vector<8x4xf32>
    %cst_3 = arith.constant 0.000000e+00 : f32
    %69 = vector.broadcast %cst_3 : f32 to vector<8x4xf32>
    %70 = arith.maximumf %68, %69 : vector<8x4xf32>
    %71 = vector.extract_strided_slice %1 {offsets = [1, 12], sizes = [1, 4], strides = [1, 1]} : vector<8x128xf32> to vector<1x4xf32>
    %72 = vector.broadcast %71 : vector<1x4xf32> to vector<8x4xf32>
    %73 = arith.mulf %70, %72 : vector<8x4xf32>
    %cst_4 = arith.constant dense<0.000000e+00> : vector<8xf32>
    %74 = vector.multi_reduction <add>, %73, %cst_4 [1] : vector<8x4xf32> to vector<8xf32>
    %75 = vector.shape_cast %74 : vector<8xf32> to vector<8x1xf32>
    %76 = vector.extract_strided_slice %1 {offsets = [2, 16], sizes = [1, 1], strides = [1, 1]} : vector<8x128xf32> to vector<1x1xf32>
    %77 = vector.broadcast %76 : vector<1x1xf32> to vector<8x1xf32>
    %78 = arith.addf %75, %77 : vector<8x1xf32>
    %c0_5 = arith.constant 0 : index
    %c0_6 = arith.constant 0 : index
    %79 = vector.load %arg3[%c0_5, %c0_6] : memref<8x1xf32, #tpu.memory_space<vmem>>, vector<8x1xf32>
    tpu.vector_store %arg3[%c0_5, %c0_6], %78 {strides = array<i32>} : memref<8x1xf32, #tpu.memory_space<vmem>>, vector<8x1xf32>,
    return
  }
  func.func @transform_0(%arg0: i32) -> (i32, i32) {
    %c0_i32 = arith.constant 0 : i32
    %c0_i32_0 = arith.constant 0 : i32
    return %arg0, %c0_i32 : i32, i32
  }
  func.func @transform_1(%arg0: i32) -> (i32, i32) {
    %c0_i32 = arith.constant 0 : i32
    %c0_i32_0 = arith.constant 0 : i32
    %c0_i32_1 = arith.constant 0 : i32
    return %c0_i32, %c0_i32_0 : i32, i32
  }
  func.func @transform_2(%arg0: i32) -> (i32, i32) {
    %c0_i32 = arith.constant 0 : i32
    %c0_i32_0 = arith.constant 0 : i32
    return %arg0, %c0_i32 : i32, i32
  }
}

</mosaic_0001>

<llo_original>
// kernel: linear_relu_regressor_forward.1
$region0: #{linear_relu_regressor_forward.1}
  #allocation0 [shape = 'u32[]', space=smem, size = 0x4, offset = 0x4, fixed_abs, tag = 'smem constant byte address 0x4 - core index']
  #allocation1 [shape = 'u32[72,128]{1,0:T(1,128)}', space=vmem, size = 0x9000, scoped, tag = 'internal scratch']
  %s0 = inlined_call_operand.vmem [shape: f32[8,2], index: 0, kind: input, shape index: {}]
  %s1 = inlined_call_operand.vmem [shape: f32[8,128], index: 1, kind: input, shape index: {}]
  %s2 = inlined_call_operand.vmem [shape: f32[8,1], index: 2, kind: output, shape index: {}]
  %s3 = sld [smem:[#allocation0]]
  $region18: #{linear_relu_regressor_forward.1} parent=0
    _
  %s5 = ssub.s32 1, %s3
  %s6 = scalar_select 0, %s5, %s3
  // Predicated region
  $region2: #{linear_relu_regressor_forward.1} parent=0 // pred_check
    _
  $region3: #{linear_relu_regressor_forward.1} parent=0 // pred_check_branch
    %8 = sbr.rel (0) target = $region5
  $region4: #{linear_relu_regressor_forward.1} parent=0 // pred_region
    _
  $region5: #{linear_relu_regressor_forward.1} parent=0 // pred_fallthru
    _
  // Predicated region
  $region6: #{linear_relu_regressor_forward.1} parent=0 // pred_check
    _
  $region7: #{linear_relu_regressor_forward.1} parent=0 // pred_check_branch
    %10 = sbr.rel (0) target = $region9
  $region8: #{linear_relu_regressor_forward.1} parent=0 // pred_region
    _
  $region9: #{linear_relu_regressor_forward.1} parent=0 // pred_fallthru
    _
  %v11 = vld [vmem:[%s0] sm:$0xff]
  %v12 = vld [vmem:[%s1] sm:$0xff]
  %14 = vset.pattern.permute.xlu0 0
  %15 = vperm.xlu0 %14, %v11
  %v16 = vpop.permute.xlu0 %15
  %v18 = vperm.slane %v12, 0
  %v19 = vmul.f32 %v16, %v18
  %20 = vset.pattern.permute.xlu0 1
  %21 = vperm.xlu0 %20, %v11
  %v22 = vpop.permute.xlu0 %21
  %v24 = vperm.slane %v12, 1
  %v25 = vmul.f32 %v22, %v24
  %v26 = vadd.f32 %v19, %v25
  %v27 = vperm.slane %v12, 2
  %v28 = vadd.f32 %v26, %v27
  %v29 = vmax.f32 %v28, 0.0
  %31 = vset.pattern.permute.xlu0 0
  %32 = vperm.xlu0 %31, %v29
  %v33 = vpop.permute.xlu0 %32
  %v35 = vmul.f32 %v33, %v18
  %37 = vrot.lane.b32.xlu0 %v35, 4
  %v38 = vpop.permute.xlu0 %37
  %v40 = vadd.f32 %v18, %v38
  %41 = vset.pattern.permute.xlu0 1
  %42 = vperm.xlu0 %41, %v29
  %v43 = vpop.permute.xlu0 %42
  %v45 = vmul.f32 %v43, %v24
  %47 = vrot.lane.b32.xlu0 %v45, 4
  %v48 = vpop.permute.xlu0 %47
  %v50 = vadd.f32 %v40, %v48
  %51 = vset.pattern.permute.xlu0 2
  %52 = vperm.xlu0 %51, %v29
  %v53 = vpop.permute.xlu0 %52
  %v55 = vmul.f32 %v53, %v27
  %57 = vrot.lane.b32.xlu0 %v55, 4
  %v58 = vpop.permute.xlu0 %57
  %v60 = vadd.f32 %v50, %v58
  %61 = vset.pattern.permute.xlu0 3
  %62 = vperm.xlu0 %61, %v29
  %v63 = vpop.permute.xlu0 %62
  %v65 = vperm.slane %v12, 3
  %v66 = vmul.f32 %v63, %v65
  %68 = vrot.lane.b32.xlu0 %v66, 4
  %v69 = vpop.permute.xlu0 %68
  %v71 = vadd.f32 %v60, %v69
  %72 = vset.pattern.permute.xlu0 4
  %73 = vperm.xlu0 %72, %v29
  %v74 = vpop.permute.xlu0 %73
  %v76 = vperm.slane %v12, 4
  %v77 = vmul.f32 %v74, %v76
  %79 = vrot.lane.b32.xlu0 %v77, 4
  %v80 = vpop.permute.xlu0 %79
  %v82 = vadd.f32 %v71, %v80
  %83 = vset.pattern.permute.xlu0 5
  %84 = vperm.xlu0 %83, %v29
  %v85 = vpop.permute.xlu0 %84
  %v87 = vperm.slane %v12, 5
  %v88 = vmul.f32 %v85, %v87
  %90 = vrot.lane.b32.xlu0 %v88, 4
  %v91 = vpop.permute.xlu0 %90
  %v93 = vadd.f32 %v82, %v91
  %94 = vset.pattern.permute.xlu0 6
  %95 = vperm.xlu0 %94, %v29
  %v96 = vpop.permute.xlu0 %95
  %v98 = vperm.slane %v12, 6
  %v99 = vmul.f32 %v96, %v98
  %101 = vrot.lane.b32.xlu0 %v99, 4
  %v102 = vpop.permute.xlu0 %101
  %v104 = vadd.f32 %v93, %v102
  %105 = vset.pattern.permute.xlu0 7
  %106 = vperm.xlu0 %105, %v29
  %v107 = vpop.permute.xlu0 %106
  %v109 = vperm.slane %v12, 7
  %v110 = vmul.f32 %v107, %v109
  %112 = vrot.lane.b32.xlu0 %v110, 4
  %v113 = vpop.permute.xlu0 %112
  %v115 = vadd.f32 %v104, %v113
  %v116 = vmax.f32 %v115, 0.0
  %v117 = vmul.f32 %v116, %v24
  %119 = vrot.lane.b32.xlu0 %v117, 116
  %v120 = vpop.permute.xlu0 %119
  %vm122 = vcmask 31744
  %v123 = vsel %vm122, %v120, 0.0
  %124 = vadd.xlane.f32.xlu0 %v123
  %v125 = vpop.xlane.xlu0 %124
  %v126 = vadd.f32 %v125, %v27
  %128 = vrot.lane.b32.xlu0 %v126, 112
  %v129 = vpop.permute.xlu0 %128
  %vm131 = vcmask 7168
  %132 = vst.msk [vmem:[%s2] sm:$0xff] %vm131, %v129
  // Predicated region
  $region10: #{linear_relu_regressor_forward.1} parent=0 // pred_check
    _
  $region11: #{linear_relu_regressor_forward.1} parent=0 // pred_check_branch
    %134 = sbr.rel (0) target = $region13
  $region12: #{linear_relu_regressor_forward.1} parent=0 // pred_region
    _
  $region13: #{linear_relu_regressor_forward.1} parent=0 // pred_fallthru
    _
  // Predicated region
  $region14: #{linear_relu_regressor_forward.1} parent=0 // pred_check
    _
  $region15: #{linear_relu_regressor_forward.1} parent=0 // pred_check_branch
    %136 = sbr.rel (0) target = $region17
  $region16: #{linear_relu_regressor_forward.1} parent=0 // pred_region
    _
  $region17: #{linear_relu_regressor_forward.1} parent=0 // pred_fallthru
    _

</llo_original>
